<compile_context>
chip_gen: v7x
topology: tpu7x:2x2x1
jax: 0.10.0
libtpu: 0.0.40
codegen_flags: <defaults>
</compile_context>

<pallas_src>
import jax
import jax.numpy as jnp
from jax.experimental import pallas as pl
from jax.experimental.pallas import tpu as pltpu


def _flatten_copy_kernel(x_ref, o_ref):
    # Identity copy of the already-flattened slab: realizes x.flatten(1).
    o_ref[...] = x_ref[...]


def _flatten_pallas(x2d: jax.Array) -> jax.Array:
    n, f = x2d.shape
    return pl.pallas_call(
        _flatten_copy_kernel,
        out_shape=jax.ShapeDtypeStruct((n, f), x2d.dtype),
        # No grid: whole (tiny) array is a single VMEM-resident block.
        in_specs=[pl.BlockSpec(memory_space=pltpu.MemorySpace.VMEM)],
        out_specs=pl.BlockSpec(memory_space=pltpu.MemorySpace.VMEM),
        # Output aliases the input buffer -> no fresh HBM allocation.
        input_output_aliases={0: 0},
    )(x2d)


@jax.jit
def flatten_from_dim1(x: jax.Array) -> jax.Array:
    """Equivalent of torch.Tensor.flatten(1) for an N-D input (N >= 2 dims)."""
    n = x.shape[0]
    f = 1
    for d in x.shape[1:]:
        f *= d
    # Glue: logical (metadata-only) reshape; the Pallas kernel is the anchor.
    x2d = x.reshape(n, f)
    return _flatten_pallas(x2d)


if __name__ == "__main__":
    key = jax.random.PRNGKey(0)
    # Shape consistent with the module's example input: [1, 1408, 1, 1]
    x341 = jax.random.normal(key, (1, 1408, 1, 1), dtype=jnp.float32)

    x342 = flatten_from_dim1(x341)
    jax.block_until_ready(x342)

    # Sanity check against the pure-JAX reference of torch's flatten(1).
    ref = x341.reshape(x341.shape[0], -1)
    assert x342.shape == (1, 1408), x342.shape
    assert x342.dtype == x341.dtype
    assert jnp.array_equal(x342, ref)

    print("KERNEL_OK")
</pallas_src>

<mosaic_0001>
module attributes {stable_mosaic.version = 11 : i64} {
  func.func @_flatten_copy_kernel(%arg0: memref<1x1408xf32, #tpu.memory_space<vmem>>, %arg1: memref<1x1408xf32, #tpu.memory_space<vmem>>) attributes {dimension_semantics = [], scalar_prefetch = 0 : i64, scratch_operands = 0 : i64, tpu.core_type = #tpu.core_type<tc>} {
    %c0 = arith.constant 0 : index
    %c0_0 = arith.constant 0 : index
    %0 = vector.load %arg0[%c0, %c0_0] : memref<1x1408xf32, #tpu.memory_space<vmem>>, vector<1x1408xf32>
    %c0_1 = arith.constant 0 : index
    %c0_2 = arith.constant 0 : index
    %1 = vector.load %arg1[%c0_1, %c0_2] : memref<1x1408xf32, #tpu.memory_space<vmem>>, vector<1x1408xf32>
    tpu.vector_store %arg1[%c0_1, %c0_2], %0 {strides = array<i32>} : memref<1x1408xf32, #tpu.memory_space<vmem>>, vector<1x1408xf32>,
    return
  }
}

</mosaic_0001>

<llo_original>
// kernel: flatten_from_dim1.1
$region0: #{flatten_from_dim1.1}
  #allocation0 [shape = 'u32[]', space=smem, size = 0x4, offset = 0x4, fixed_abs, tag = 'smem constant byte address 0x4 - core index']
  #allocation1 [shape = 'u32[144,128]{1,0:T(1,128)}', space=vmem, size = 0x12000, scoped, tag = 'internal scratch']
  %s0 = inlined_call_operand.hbm [shape: f32[1,1408], index: 0, kind: input, shape index: {}, may-alias: {0,1}]
  %s1 = inlined_call_operand.hbm [shape: f32[1,1408], index: 1, kind: output, shape index: {}, may-alias: {0,1}]
  %s2 = sld [smem:[#allocation0]]
  $region18: #{flatten_from_dim1.1} parent=0
    _
  %s4 = ssub.s32 1, %s2
  %s5 = scalar_select 0, %s4, %s2
  $region1: #{flatten_from_dim1.1} parent=0
    #allocation2 [shape = 'u8[5632]{0}', space=vmem, size = 0x1800, scoped, tag = 'input window, operand 0, single buffered']
    #allocation3 [shape = 's32[1]{0}', space=sflag, size = 0x4, scoped, tag = 'scoped memory for flatten_from_dim1.1']
    #allocation4 [shape = 's32[1]{0}', space=sflag, size = 0x4, scoped, tag = 'scoped memory for flatten_from_dim1.1']
    #allocation5 [shape = 'u8[5632]{0}', space=vmem, size = 0x1800, scoped, tag = 'output window, operand 0, single buffered']
    %6 = vsyncpa [#allocation3], 0
    %7 = vsyncpa [#allocation4], 0
    // Predicated region
    $region2: #{flatten_from_dim1.1} parent=1 // pred_check
      _
    $region3: #{flatten_from_dim1.1} parent=1 // pred_check_branch
      %9 = sbr.rel (0) target = $region5
    $region4: #{flatten_from_dim1.1} parent=1 // pred_region
      %s11 = ssub.s32 176, 176
      %12 = vsyncadd [#allocation3], %s11
      %s14 = sshll.u32 [#allocation2], 4
      %s15 = int_to_ptr.vmem [resolvable:$true] %s14
      %17 = dma.hbm_to_vmem [thread:$0]  %s0, 176, %s15, [#allocation3]
    $region5: #{flatten_from_dim1.1} parent=1 // pred_fallthru
      _
    // Predicated region
    $region6: #{flatten_from_dim1.1} parent=1 // pred_check
      _
    $region7: #{flatten_from_dim1.1} parent=1 // pred_check_branch
      %19 = sbr.rel (0) target = $region9
    $region8: #{flatten_from_dim1.1} parent=1 // pred_region
      %20 = dma.done [#allocation3], 176
    $region9: #{flatten_from_dim1.1} parent=1 // pred_fallthru
      _
    %v21 = vld [vmem:[#allocation2] sm:$0xff]
    %v22 = vld [vmem:[#allocation2 + $0x8] sm:$0x7]
    %23 = vst [vmem:[#allocation5] sm:$0xff] %v21
    %v24 = vlaneseq
    %vm25 = vcmp.ge.s32.totalorder %v24, 0
    %vm26 = vcmp.lt.s32.totalorder %v24, 384
    %vm27 = vmand %vm25, %vm26
    %28 = vst.msk [vmem:[#allocation5 + $0x8] sm:$0x7] %vm27, %v22
    // Predicated region
    $region10: #{flatten_from_dim1.1} parent=1 // pred_check
      _
    $region11: #{flatten_from_dim1.1} parent=1 // pred_check_branch
      %30 = sbr.rel (0) target = $region13
    $region12: #{flatten_from_dim1.1} parent=1 // pred_region
      %s32 = ssub.s32 176, 176
      %33 = vsyncadd [#allocation4], %s32
      %s35 = sshll.u32 [#allocation5], 4
      %s36 = int_to_ptr.vmem [resolvable:$true] %s35
      %38 = dma.vmem_to_hbm [thread:$0]  %s36, 176, %s1, [#allocation4]
    $region13: #{flatten_from_dim1.1} parent=1 // pred_fallthru
      _
    // Predicated region
    $region14: #{flatten_from_dim1.1} parent=1 // pred_check
      _
    $region15: #{flatten_from_dim1.1} parent=1 // pred_check_branch
      %40 = sbr.rel (0) target = $region17
    $region16: #{flatten_from_dim1.1} parent=1 // pred_region
      %41 = dma.done [#allocation4], 176
    $region17: #{flatten_from_dim1.1} parent=1 // pred_fallthru
      _
    %42 = vsyncpa [#allocation3], 1
    %43 = vsyncpa [#allocation4], 1

</llo_original>
